<compile_context>
chip_gen: v7x
topology: tpu7x:2x2x1
jax: 0.10.0
libtpu: 0.0.40
codegen_flags: <defaults>
</compile_context>

<pallas_src>
import functools

import numpy as np
import jax
import jax.numpy as jnp
from jax import lax
from jax.experimental import pallas as pl
from jax.experimental.pallas import tpu as pltpu

IMG_FLAT = 400           # 20*20 flattened input pixels
CONV_ROWS = 656          # 400 (conv1 Toeplitz) + 256 (conv2)
SLAB_COLS = 256

# f32 tail-slab row layout (all starts are multiples of 8)
T_W3 = 0                 # (16,16)  Linear(16,12).T  (cols 12:16 zero)
T_W4 = 16                # (16,8)   Linear(12,8).T   (rows 12:16 zero)
T_W5 = 32                # (8,128)  Linear(8,A).T    (cols A:128 zero)
T_B = 40                 # 8 bias rows: b1(tiled,256) / b2 / b3 / b4 / b5(padded)
TAIL_ROWS = 48


def cnn_kernel(x_ref, wc_ref, wt_ref, out_ref):
    f32 = jnp.float32
    bf16 = jnp.bfloat16

    bias = wt_ref[T_B:T_B + 8, :]       # one (8,256) load, then cheap value slices
    b1 = bias[0:1, :]                   # conv1 bias tiled per output position
    b2 = bias[1:2, 0:16]
    b3 = bias[2:3, 0:16]
    b4 = bias[3:4, 0:8]
    b5 = bias[4:5, 0:128]

    x = x_ref[...].astype(bf16)                                          # (BT, 400)

    # conv1 + ReLU (Toeplitz-folded): bf16 MXU matmul, f32 accumulate -> (BT, 256)
    a = jnp.dot(x, wc_ref[0:IMG_FLAT, :], preferred_element_type=f32)
    a = jnp.maximum(a + b1, 0.0)

    # conv2 + ReLU: single (BT,256)@(256,16) MXU matmul -> (BT, 16)
    h2 = jnp.dot(a.astype(bf16), wc_ref[IMG_FLAT:CONV_ROWS, 0:16],
                 preferred_element_type=f32)
    h2 = jnp.maximum(h2 + b2, 0.0)

    # Linear(16,12) + ReLU (padded cols 12:16 stay exactly zero)
    h3 = jnp.dot(h2, wt_ref[T_W3:T_W3 + 16, 0:16], preferred_element_type=f32)
    h3 = jnp.maximum(h3 + b3, 0.0)

    # Linear(12,8) + ReLU
    h4 = jnp.dot(h3, wt_ref[T_W4:T_W4 + 16, 0:8], preferred_element_type=f32)
    h4 = jnp.maximum(h4 + b4, 0.0)

    # Linear(8,A) written as a lane-dense (BT,128) block (cols A:128 are zero)
    out_ref[...] = jnp.dot(h4, wt_ref[T_W5:T_W5 + 8, 0:128],
                           preferred_element_type=f32) + b5


def prepare_params(params, action_dim):
    """One-time re-layout of PyTorch-style params into a bf16 conv slab + f32 tail slab."""
    w1, b1, w2, b2, w3, b3, w4, b4, w5, b5 = [np.asarray(p, np.float32) for p in params]
    assert action_dim <= 128

    # conv1 (1->16, k=8, s=4) folded with im2col into a dense (flat-pixel -> pos*16+ch) matrix
    conv = np.zeros((CONV_ROWS, SLAB_COLS), np.float32)
    for p in range(16):
        oh, ow = divmod(p, 4)
        for kh in range(8):
            for kw in range(8):
                hw = (oh * 4 + kh) * 20 + (ow * 4 + kw)
                conv[hw, p * 16:(p + 1) * 16] = w1[:, 0, kh, kw]
    # conv2 (16->16, k=4 covers the whole 4x4 map): rows ordered (pos=kh*4+kw)*16 + in_ch
    conv[IMG_FLAT:CONV_ROWS, 0:16] = np.transpose(w2, (2, 3, 1, 0)).reshape(256, 16)

    tail = np.zeros((TAIL_ROWS, SLAB_COLS), np.float32)
    tail[T_W3:T_W3 + 16, 0:12] = w3.T
    tail[T_W4:T_W4 + 12, 0:8] = w4.T
    tail[T_W5:T_W5 + 8, 0:action_dim] = w5.T
    tail[T_B + 0, :] = np.tile(b1, 16)            # b1 broadcast per conv1 position
    tail[T_B + 1, 0:16] = b2
    tail[T_B + 2, 0:12] = b3
    tail[T_B + 3, 0:8] = b4
    tail[T_B + 4, 0:action_dim] = b5

    # Invariant: padded weight/bias slots are exactly zero so ReLU keeps them zero.
    assert np.all(tail[T_W3:T_W3 + 16, 12:] == 0.0)
    assert np.all(tail[T_W4 + 12:T_W4 + 16, :] == 0.0)
    assert np.all(tail[T_B + 2, 12:] == 0.0)
    assert np.all(tail[T_B + 3, 8:] == 0.0)
    assert np.all(tail[T_B + 4, action_dim:] == 0.0)

    return jnp.asarray(conv, jnp.bfloat16), jnp.asarray(tail, jnp.float32)


def _pick_bt(batch):
    """Largest sublane-aligned batch tile (<=256, already fills MXU M rows) that
    still leaves >=2 grid steps so v7x's two TensorCores can split the batch."""
    for bt in (256, 128, 64, 32, 16):
        if batch >= 2 * bt:
            return bt
    return 8


@functools.partial(jax.jit, static_argnames=("action_dim",))
def cnn_net_forward_batch(x, wconv, wtail, *, action_dim):
    """x: (B, 1, 20, 20) float32 -> (B, action_dim)."""
    B = x.shape[0]
    bt = _pick_bt(B)
    steps = pl.cdiv(B, bt)
    xf = x.reshape(B, IMG_FLAT)   # contiguous reshape: no pad, no extra HBM copy

    out = pl.pallas_call(
        cnn_kernel,
        out_shape=jax.ShapeDtypeStruct((steps * bt, 128), jnp.float32),
        grid=(steps,),
        in_specs=[
            pl.BlockSpec((bt, IMG_FLAT), lambda i: (i, 0)),          # batch tile (partial last block OK)
            pl.BlockSpec((CONV_ROWS, SLAB_COLS), lambda i: (0, 0)),  # resident bf16 conv slab
            pl.BlockSpec((TAIL_ROWS, SLAB_COLS), lambda i: (0, 0)),  # resident f32 tail slab
        ],
        out_specs=pl.BlockSpec((bt, 128), lambda i: (i, 0)),         # lane-dense output
        compiler_params=pltpu.CompilerParams(dimension_semantics=("parallel",)),
    )(xf, wconv, wtail)
    return out[:B, :action_dim]


def cnn_net_forward(x, wconv, wtail, *, action_dim):
    """Matches CNNNet.forward: x is a single (1, 20, 20) CHW observation -> (1, action_dim)."""
    return cnn_net_forward_batch(x[None], wconv, wtail, action_dim=action_dim)


def ref_forward(x, params):
    """Pure-JAX reference matching the PyTorch module semantics (x: (1,20,20))."""
    (w1, b1, w2, b2, w3, b3, w4, b4, w5, b5) = params
    xb = x[None]  # (1, 1, 20, 20)
    dn = ('NCHW', 'OIHW', 'NCHW')
    y = lax.conv_general_dilated(xb, w1, (4, 4), 'VALID', dimension_numbers=dn)
    y = jnp.maximum(y + b1[None, :, None, None], 0.0)
    y = lax.conv_general_dilated(y, w2, (2, 2), 'VALID', dimension_numbers=dn)
    y = jnp.maximum(y + b2[None, :, None, None], 0.0)
    f = y.reshape(1, -1)                                  # (1, 16)
    f = jnp.maximum(f @ w3.T + b3, 0.0)
    f = jnp.maximum(f @ w4.T + b4, 0.0)
    return f @ w5.T + b5


def init_params(key, action_dim):
    def uniform(k, shape, fan_in):
        bound = 1.0 / jnp.sqrt(jnp.float32(fan_in))
        return jax.random.uniform(k, shape, jnp.float32, -bound, bound)

    ks = jax.random.split(key, 10)
    w1 = uniform(ks[0], (16, 1, 8, 8), 1 * 8 * 8)
    b1 = uniform(ks[1], (16,), 1 * 8 * 8)
    w2 = uniform(ks[2], (16, 16, 4, 4), 16 * 4 * 4)
    b2 = uniform(ks[3], (16,), 16 * 4 * 4)
    w3 = uniform(ks[4], (12, 16), 16)
    b3 = uniform(ks[5], (12,), 16)
    w4 = uniform(ks[6], (8, 12), 12)
    b4 = uniform(ks[7], (8,), 12)
    w5 = uniform(ks[8], (action_dim, 8), 8)
    b5 = uniform(ks[9], (action_dim,), 8)
    return (w1, b1, w2, b2, w3, b3, w4, b4, w5, b5)


if __name__ == "__main__":
    action_dim = 4
    key = jax.random.PRNGKey(0)
    k_x, k_p, k_b = jax.random.split(key, 3)

    # (1,20,20) -> conv(8,4) -> (16,4,4) -> conv(4,2) -> (16,1,1) -> flatten -> 16 features.
    x = jax.random.normal(k_x, (1, 20, 20), dtype=jnp.float32)
    params = init_params(k_p, action_dim)
    wconv, wtail = prepare_params(params, action_dim)   # one-time packing / bf16 cast

    # Tolerance is loosened vs. a pure-f32 kernel because the conv matmuls use
    # bf16 inputs (f32 accumulation keeps the error small).
    atol = rtol = 2e-2

    # Single-observation forward (module semantics; exercises the partial last block).
    out = jax.block_until_ready(cnn_net_forward(x, wconv, wtail, action_dim=action_dim))
    ref = jax.block_until_ready(ref_forward(x, params))
    assert out.shape == (1, action_dim)
    assert jnp.allclose(out, ref, atol=atol, rtol=rtol), (out, ref)

    # Batched path (grid over batch tiles; amortizes launch/DMA overhead).
    xb = jax.random.normal(k_b, (16, 1, 20, 20), dtype=jnp.float32)
    outb = jax.block_until_ready(cnn_net_forward_batch(xb, wconv, wtail, action_dim=action_dim))
    refb = jax.block_until_ready(jax.vmap(lambda xi: ref_forward(xi, params)[0])(xb))
    assert outb.shape == (16, action_dim)
    assert jnp.allclose(outb, refb, atol=atol, rtol=rtol), (outb, refb)

    print("KERNEL_OK")
</pallas_src>

<mosaic_0001>
module attributes {stable_mosaic.version = 11 : i64} {
  func.func @cnn_kernel(%arg0: i32, %arg1: memref<8x400xf32, #tpu.memory_space<vmem>>, %arg2: memref<656x256xbf16, #tpu.memory_space<vmem>>, %arg3: memref<48x256xf32, #tpu.memory_space<vmem>>, %arg4: memref<8x128xf32, #tpu.memory_space<vmem>>) attributes {dimension_semantics = [#tpu.dimension_semantics<parallel>], iteration_bounds = array<i64: 1>, scalar_prefetch = 0 : i64, scratch_operands = 0 : i64, tpu.core_type = #tpu.core_type<tc>, window_params = [{transform_indices = @transform_0, window_bounds = array<i64: 8, 400>}, {pipeline_mode = #tpu.pipeline_mode<synchronous>, transform_indices = @transform_1, window_bounds = array<i64: 656, 256>}, {pipeline_mode = #tpu.pipeline_mode<synchronous>, transform_indices = @transform_2, window_bounds = array<i64: 48, 256>}, {transform_indices = @transform_3, window_bounds = array<i64: 8, 128>}]} {
    %c40 = arith.constant 40 : index
    %c0 = arith.constant 0 : index
    %0 = vector.load %arg3[%c40, %c0] : memref<48x256xf32, #tpu.memory_space<vmem>>, vector<8x256xf32>
    %1 = vector.extract_strided_slice %0 {offsets = [0, 0], sizes = [1, 256], strides = [1, 1]} : vector<8x256xf32> to vector<1x256xf32>
    %2 = vector.extract_strided_slice %0 {offsets = [1, 0], sizes = [1, 16], strides = [1, 1]} : vector<8x256xf32> to vector<1x16xf32>
    %3 = vector.extract_strided_slice %0 {offsets = [2, 0], sizes = [1, 16], strides = [1, 1]} : vector<8x256xf32> to vector<1x16xf32>
    %4 = vector.extract_strided_slice %0 {offsets = [3, 0], sizes = [1, 8], strides = [1, 1]} : vector<8x256xf32> to vector<1x8xf32>
    %5 = vector.extract_strided_slice %0 {offsets = [4, 0], sizes = [1, 128], strides = [1, 1]} : vector<8x256xf32> to vector<1x128xf32>
    %c0_0 = arith.constant 0 : index
    %c0_1 = arith.constant 0 : index
    %6 = vector.load %arg1[%c0_0, %c0_1] : memref<8x400xf32, #tpu.memory_space<vmem>>, vector<8x400xf32>
    %7 = arith.truncf %6 : vector<8x400xf32> to vector<8x400xbf16>
    %c0_2 = arith.constant 0 : index
    %c0_3 = arith.constant 0 : index
    %8 = vector.load %arg2[%c0_2, %c0_3] : memref<656x256xbf16, #tpu.memory_space<vmem>>, vector<400x256xbf16>
    %cst = arith.constant dense<0.000000e+00> : vector<8x256xf32>
    %9 = tpu.matmul %7, %8, %cst {dimension_numbers = #tpu.dot_dimension_numbers<[1], [0], [0], [1], [0, 0, 1, 1], [], []>} : vector<8x400xbf16>, vector<400x256xbf16>, vector<8x256xf32> -> vector<8x256xf32>
    %10 = vector.broadcast %1 : vector<1x256xf32> to vector<8x256xf32>
    %11 = arith.addf %9, %10 : vector<8x256xf32>
    %cst_4 = arith.constant 0.000000e+00 : f32
    %12 = vector.broadcast %cst_4 : f32 to vector<8x256xf32>
    %13 = arith.maximumf %11, %12 : vector<8x256xf32>
    %14 = arith.truncf %13 : vector<8x256xf32> to vector<8x256xbf16>
    %c400 = arith.constant 400 : index
    %c0_5 = arith.constant 0 : index
    %15 = vector.load %arg2[%c400, %c0_5] : memref<656x256xbf16, #tpu.memory_space<vmem>>, vector<256x16xbf16>
    %cst_6 = arith.constant dense<0.000000e+00> : vector<8x16xf32>
    %16 = tpu.matmul %14, %15, %cst_6 {dimension_numbers = #tpu.dot_dimension_numbers<[1], [0], [0], [1], [0, 0, 1, 1], [], []>} : vector<8x256xbf16>, vector<256x16xbf16>, vector<8x16xf32> -> vector<8x16xf32>
    %17 = vector.broadcast %2 : vector<1x16xf32> to vector<8x16xf32>
    %18 = arith.addf %16, %17 : vector<8x16xf32>
    %cst_7 = arith.constant 0.000000e+00 : f32
    %19 = vector.broadcast %cst_7 : f32 to vector<8x16xf32>
    %20 = arith.maximumf %18, %19 : vector<8x16xf32>
    %c0_8 = arith.constant 0 : index
    %c0_9 = arith.constant 0 : index
    %21 = vector.load %arg3[%c0_8, %c0_9] : memref<48x256xf32, #tpu.memory_space<vmem>>, vector<16x16xf32>
    %cst_10 = arith.constant dense<0.000000e+00> : vector<8x16xf32>
    %22 = tpu.matmul %20, %21, %cst_10 {dimension_numbers = #tpu.dot_dimension_numbers<[1], [0], [0], [1], [0, 0, 1, 1], [], []>} : vector<8x16xf32>, vector<16x16xf32>, vector<8x16xf32> -> vector<8x16xf32>
    %23 = vector.broadcast %3 : vector<1x16xf32> to vector<8x16xf32>
    %24 = arith.addf %22, %23 : vector<8x16xf32>
    %cst_11 = arith.constant 0.000000e+00 : f32
    %25 = vector.broadcast %cst_11 : f32 to vector<8x16xf32>
    %26 = arith.maximumf %24, %25 : vector<8x16xf32>
    %c16 = arith.constant 16 : index
    %c0_12 = arith.constant 0 : index
    %27 = vector.load %arg3[%c16, %c0_12] : memref<48x256xf32, #tpu.memory_space<vmem>>, vector<16x8xf32>
    %cst_13 = arith.constant dense<0.000000e+00> : vector<8x8xf32>
    %28 = tpu.matmul %26, %27, %cst_13 {dimension_numbers = #tpu.dot_dimension_numbers<[1], [0], [0], [1], [0, 0, 1, 1], [], []>} : vector<8x16xf32>, vector<16x8xf32>, vector<8x8xf32> -> vector<8x8xf32>
    %29 = vector.broadcast %4 : vector<1x8xf32> to vector<8x8xf32>
    %30 = arith.addf %28, %29 : vector<8x8xf32>
    %cst_14 = arith.constant 0.000000e+00 : f32
    %31 = vector.broadcast %cst_14 : f32 to vector<8x8xf32>
    %32 = arith.maximumf %30, %31 : vector<8x8xf32>
    %c32 = arith.constant 32 : index
    %c0_15 = arith.constant 0 : index
    %33 = vector.load %arg3[%c32, %c0_15] : memref<48x256xf32, #tpu.memory_space<vmem>>, vector<8x128xf32>
    %cst_16 = arith.constant dense<0.000000e+00> : vector<8x128xf32>
    %34 = tpu.matmul %32, %33, %cst_16 {dimension_numbers = #tpu.dot_dimension_numbers<[1], [0], [0], [1], [0, 0, 1, 1], [], []>} : vector<8x8xf32>, vector<8x128xf32>, vector<8x128xf32> -> vector<8x128xf32>
    %35 = vector.broadcast %5 : vector<1x128xf32> to vector<8x128xf32>
    %36 = arith.addf %34, %35 : vector<8x128xf32>
    %c0_17 = arith.constant 0 : index
    %c0_18 = arith.constant 0 : index
    %37 = vector.load %arg4[%c0_17, %c0_18] : memref<8x128xf32, #tpu.memory_space<vmem>>, vector<8x128xf32>
    tpu.vector_store %arg4[%c0_17, %c0_18], %36 {strides = array<i32>} : memref<8x128xf32, #tpu.memory_space<vmem>>, vector<8x128xf32>,
    return
  }
  func.func @transform_0(%arg0: i32) -> (i32, i32) {
    %c0_i32 = arith.constant 0 : i32
    %c0_i32_0 = arith.constant 0 : i32
    return %arg0, %c0_i32 : i32, i32
  }
  func.func @transform_1(%arg0: i32) -> (i32, i32) {
    %c0_i32 = arith.constant 0 : i32
    %c0_i32_0 = arith.constant 0 : i32
    %c0_i32_1 = arith.constant 0 : i32
    return %c0_i32, %c0_i32_0 : i32, i32
  }
  func.func @transform_2(%arg0: i32) -> (i32, i32) {
    %c0_i32 = arith.constant 0 : i32
    %c0_i32_0 = arith.constant 0 : i32
    %c0_i32_1 = arith.constant 0 : i32
    return %c0_i32, %c0_i32_0 : i32, i32
  }
  func.func @transform_3(%arg0: i32) -> (i32, i32) {
    %c0_i32 = arith.constant 0 : i32
    %c0_i32_0 = arith.constant 0 : i32
    return %arg0, %c0_i32 : i32, i32
  }
}

</mosaic_0001>

<llo_original>
// kernel: cnn_net_forward_batch.1
$region0: #{cnn_net_forward_batch.1}
  #allocation0 [shape = 'u32[]', space=smem, size = 0x4, offset = 0x4, fixed_abs, tag = 'smem constant byte address 0x4 - core index']
  #allocation1 [shape = 'u32[144,128]{1,0:T(1,128)}', space=vmem, size = 0x12000, scoped, tag = 'internal scratch']
  %s0 = inlined_call_operand.vmem [shape: f32[1,400], index: 0, kind: input, shape index: {}]
  %s1 = inlined_call_operand.hbm [shape: bf16[656,256], index: 1, kind: input, shape index: {}]
  %s2 = inlined_call_operand.hbm [shape: f32[48,256], index: 2, kind: input, shape index: {}]
  %s3 = inlined_call_operand.vmem [shape: f32[8,128], index: 3, kind: output, shape index: {}]
  %s4 = sld [smem:[#allocation0]]
  $region30: #{cnn_net_forward_batch.1} parent=0
    _
  %s6 = ssub.s32 1, %s4
  %s7 = scalar_select 0, %s6, %s4
  $region1: #{cnn_net_forward_batch.1} parent=0
    #allocation2 [shape = 'u8[335872]{0}', space=vmem, size = 0x52000, scoped, tag = 'input window, operand 1, single buffered']
    #allocation3 [shape = 's32[1]{0}', space=sflag, size = 0x4, scoped, tag = 'scoped memory for cnn_net_forward_batch.1']
    #allocation4 [shape = 'u8[49152]{0}', space=vmem, size = 0xc000, scoped, tag = 'input window, operand 2, single buffered']
    #allocation5 [shape = 's32[1]{0}', space=sflag, size = 0x4, scoped, tag = 'scoped memory for cnn_net_forward_batch.1']
    %8 = vsyncpa [#allocation3], 0
    %9 = vsyncpa [#allocation5], 0
    // Predicated region
    $region2: #{cnn_net_forward_batch.1} parent=1 // pred_check
      _
    $region3: #{cnn_net_forward_batch.1} parent=1 // pred_check_branch
      %11 = sbr.rel (0) target = $region5
    $region4: #{cnn_net_forward_batch.1} parent=1 // pred_region
      _
    $region5: #{cnn_net_forward_batch.1} parent=1 // pred_fallthru
      _
    // Predicated region
    $region6: #{cnn_net_forward_batch.1} parent=1 // pred_check
      _
    $region7: #{cnn_net_forward_batch.1} parent=1 // pred_check_branch
      %13 = sbr.rel (0) target = $region9
    $region8: #{cnn_net_forward_batch.1} parent=1 // pred_region
      %s15 = ssub.s32 10496, 10496
      %16 = vsyncadd [#allocation3], %s15
      %s17 = sshll.u32 [#allocation2], 4
      %s18 = int_to_ptr.vmem [resolvable:$true] %s17
      %23 = dma.hbm_to_vmem [thread:$0]  %s1, 10496, %s18, [#allocation3], 128, 128, 8
    $region9: #{cnn_net_forward_batch.1} parent=1 // pred_fallthru
      _
    // Predicated region
    $region10: #{cnn_net_forward_batch.1} parent=1 // pred_check
      _
    $region11: #{cnn_net_forward_batch.1} parent=1 // pred_check_branch
      %25 = sbr.rel (0) target = $region13
    $region12: #{cnn_net_forward_batch.1} parent=1 // pred_region
      %s27 = ssub.s32 1536, 1536
      %28 = vsyncadd [#allocation5], %s27
      %s29 = sshll.u32 [#allocation4], 4
      %s30 = int_to_ptr.vmem [resolvable:$true] %s29
      %35 = dma.hbm_to_vmem [thread:$0]  %s2, 1536, %s30, [#allocation5], 256, 256, 16
    $region13: #{cnn_net_forward_batch.1} parent=1 // pred_fallthru
      _
    // Predicated region
    $region14: #{cnn_net_forward_batch.1} parent=1 // pred_check
      _
    $region15: #{cnn_net_forward_batch.1} parent=1 // pred_check_branch
      %37 = sbr.rel (0) target = $region17
    $region16: #{cnn_net_forward_batch.1} parent=1 // pred_region
      %38 = dma.done [#allocation3], 10496
    $region17: #{cnn_net_forward_batch.1} parent=1 // pred_fallthru
      _
    // Predicated region
    $region18: #{cnn_net_forward_batch.1} parent=1 // pred_check
      _
    $region19: #{cnn_net_forward_batch.1} parent=1 // pred_check_branch
      %40 = sbr.rel (0) target = $region21
    $region20: #{cnn_net_forward_batch.1} parent=1 // pred_region
      %41 = dma.done [#allocation5], 1536
    $region21: #{cnn_net_forward_batch.1} parent=1 // pred_fallthru
      _
    %v43 = vld [vmem:[#allocation4 + $0x50] sm:$0xff]
    %v44 = vld [vmem:[#allocation4 + $0x58] sm:$0xff]
    %v45 = vld [vmem:[%s0] sm:$0xf]
    %v46 = vld [vmem:[%s0 + $0x4] sm:$0xf]
    %v47 = vld [vmem:[%s0 + $0x8] sm:$0xf]
    %v48 = vld [vmem:[%s0 + $0xc] sm:$0xf]
    %v49 = vld [vmem:[%s0 + $0x10] sm:$0xf]
    %v50 = vld [vmem:[%s0 + $0x14] sm:$0xf]
    %v51 = vld [vmem:[%s0 + $0x18] sm:$0xf]
    %v52 = vld [vmem:[%s0 + $0x1c] sm:$0xf]
    %v61 = vcombine.low %v45, %v46
    %v62 = vcombine.low %v47, %v48
    %v63 = vcombine.low %v49, %v50
    %v64 = vcombine.low %v51, %v52
    %v66 = vunpack.c.l.s4 1966171168
    %v67 = vunpack.c.0.s8 %v66
    %v68 = vlaneseq
    %v69 = vshrl.u32 %v68, 7
    %v70 = vsub.s32 %v67, %v69
    %v71 = vrot.slane %v61, %v70
    %v73 = vunpack.c.l.s4 1966171168
    %v74 = vunpack.c.0.s8 %v73
    %v75 = vlaneseq
    %v76 = vshrl.u32 %v75, 7
    %v77 = vsub.s32 %v74, %v76
    %v78 = vrot.slane %v62, %v77
    %v80 = vunpack.c.l.s4 1966171168
    %v81 = vunpack.c.0.s8 %v80
    %v82 = vlaneseq
    %v83 = vshrl.u32 %v82, 7
    %v84 = vsub.s32 %v81, %v83
    %v85 = vrot.slane %v63, %v84
    %v87 = vunpack.c.l.s4 1966171168
    %v88 = vunpack.c.0.s8 %v87
    %v89 = vlaneseq
    %v90 = vshrl.u32 %v89, 7
    %v91 = vsub.s32 %v88, %v90
    %v92 = vrot.slane %v64, %v91
    %v93 = vcombine.low %v71, %v78
    %v94 = vcombine.high %v71, %v78
    %v95 = vcombine.low %v85, %v92
    %v96 = vcombine.high %v85, %v92
    %v98 = vunpack.c.l.s4 1966171168
    %v99 = vunpack.c.0.s8 %v98
    %v100 = vlaneseq
    %v101 = vshrl.u32 %v100, 7
    %v102 = vsub.s32 %v99, %v101
    %v103 = vrot.slane %v93, %v102
    %v105 = vunpack.c.l.s4 1966171168
    %v106 = vunpack.c.0.s8 %v105
    %v107 = vlaneseq
    %v108 = vshrl.u32 %v107, 7
    %v109 = vsub.s32 %v106, %v108
    %v110 = vrot.slane %v94, %v109
    %v112 = vunpack.c.l.s4 1966171168
    %v113 = vunpack.c.0.s8 %v112
    %v114 = vlaneseq
    %v115 = vshrl.u32 %v114, 7
    %v116 = vsub.s32 %v113, %v115
    %v117 = vrot.slane %v95, %v116
    %v119 = vunpack.c.l.s4 1966171168
    %v120 = vunpack.c.0.s8 %v119
    %v121 = vlaneseq
    %v122 = vshrl.u32 %v121, 7
    %v123 = vsub.s32 %v120, %v122
    %v124 = vrot.slane %v96, %v123
    %v125 = vcombine.low %v103, %v117
    %v126 = vcombine.high %v103, %v117
    %v127 = vcombine.low %v110, %v124
    %v128 = vcombine.high %v110, %v124
    %v133 = vpack.c.bf16 %v125, %v125
    %v134 = vpack.c.bf16 %v127, %v127
    %v135 = vpack.c.bf16 %v126, %v126
    %v136 = vpack.c.bf16 %v128, %v128
    %v137 = vld [vmem:[#allocation2] sm:$0xff]
    %v138 = vld [vmem:[#allocation2 + $0x8] sm:$0xff]
    %v139 = vld [vmem:[#allocation2 + $0x10] sm:$0xff]
    %v140 = vld [vmem:[#allocation2 + $0x18] sm:$0xff]
    %v141 = vld [vmem:[#allocation2 + $0x20] sm:$0xff]
    %v142 = vld [vmem:[#allocation2 + $0x28] sm:$0xff]
    %v143 = vld [vmem:[#allocation2 + $0x30] sm:$0xff]
    %v144 = vld [vmem:[#allocation2 + $0x38] sm:$0xff]
    %v145 = vld [vmem:[#allocation2 + $0x40] sm:$0xff]
    %v146 = vld [vmem:[#allocation2 + $0x48] sm:$0xff]
    %v147 = vld [vmem:[#allocation2 + $0x50] sm:$0xff]
    %v148 = vld [vmem:[#allocation2 + $0x58] sm:$0xff]
    %v149 = vld [vmem:[#allocation2 + $0x60] sm:$0xff]
    %v150 = vld [vmem:[#allocation2 + $0x68] sm:$0xff]
    %v151 = vld [vmem:[#allocation2 + $0x70] sm:$0xff]
    %v152 = vld [vmem:[#allocation2 + $0x78] sm:$0xff]
    %v153 = vld [vmem:[#allocation2 + $0x80] sm:$0xff]
    %v154 = vld [vmem:[#allocation2 + $0x88] sm:$0xff]
    %v155 = vld [vmem:[#allocation2 + $0x90] sm:$0xff]
    %v156 = vld [vmem:[#allocation2 + $0x98] sm:$0xff]
    %v157 = vld [vmem:[#allocation2 + $0xa0] sm:$0xff]
    %v158 = vld [vmem:[#allocation2 + $0xa8] sm:$0xff]
    %v159 = vld [vmem:[#allocation2 + $0xb0] sm:$0xff]
    %v160 = vld [vmem:[#allocation2 + $0xb8] sm:$0xff]
    %v161 = vld [vmem:[#allocation2 + $0xc0] sm:$0xff]
    %v162 = vld [vmem:[#allocation2 + $0xc8] sm:$0xff]
    %v163 = vld [vmem:[#allocation2 + $0xd0] sm:$0xff]
    %v164 = vld [vmem:[#allocation2 + $0xd8] sm:$0xff]
    %v165 = vld [vmem:[#allocation2 + $0xe0] sm:$0xff]
    %v166 = vld [vmem:[#allocation2 + $0xe8] sm:$0xff]
    %v167 = vld [vmem:[#allocation2 + $0xf0] sm:$0xff]
    %v168 = vld [vmem:[#allocation2 + $0xf8] sm:$0xff]
    %v169 = vld [vmem:[#allocation2 + $0x100] sm:$0xff]
    %v170 = vld [vmem:[#allocation2 + $0x108] sm:$0xff]
    %v171 = vld [vmem:[#allocation2 + $0x110] sm:$0xff]
    %v172 = vld [vmem:[#allocation2 + $0x118] sm:$0xff]
    %v173 = vld [vmem:[#allocation2 + $0x120] sm:$0xff]
    %v174 = vld [vmem:[#allocation2 + $0x128] sm:$0xff]
    %v175 = vld [vmem:[#allocation2 + $0x130] sm:$0xff]
    %v176 = vld [vmem:[#allocation2 + $0x138] sm:$0xff]
    %v177 = vld [vmem:[#allocation2 + $0x140] sm:$0xff]
    %v178 = vld [vmem:[#allocation2 + $0x148] sm:$0xff]
    %v179 = vld [vmem:[#allocation2 + $0x150] sm:$0xff]
    %v180 = vld [vmem:[#allocation2 + $0x158] sm:$0xff]
    %v181 = vld [vmem:[#allocation2 + $0x160] sm:$0xff]
    %v182 = vld [vmem:[#allocation2 + $0x168] sm:$0xff]
    %v183 = vld [vmem:[#allocation2 + $0x170] sm:$0xff]
    %v184 = vld [vmem:[#allocation2 + $0x178] sm:$0xff]
    %v185 = vld [vmem:[#allocation2 + $0x180] sm:$0xff]
    %v186 = vld [vmem:[#allocation2 + $0x188] sm:$0xff]
    %v187 = vlaneseq
    %v188 = vshrl.u32 %v187, 7
    %v189 = vsub.s32 0, %v188
    %v190 = vrot.slane %v43, %v189
    %v191 = vlaneseq
    %v192 = vshrl.u32 %v191, 7
    %v193 = vsub.s32 0, %v192
    %v194 = vrot.slane %v44, %v193
    %v245 = vunpack.c.l.b16 %v137
    %v246 = vunpack.c.h.b16 %v137
    %v247 = vunpack.c.l.b16 %v138
    %v248 = vunpack.c.h.b16 %v138
    %v249 = vunpack.c.l.b16 %v139
    %v250 = vunpack.c.h.b16 %v139
    %v251 = vunpack.c.l.b16 %v140
    %v252 = vunpack.c.h.b16 %v140
    %v253 = vunpack.c.l.b16 %v141
    %v254 = vunpack.c.h.b16 %v141
    %v255 = vunpack.c.l.b16 %v142
    %v256 = vunpack.c.h.b16 %v142
    %v257 = vunpack.c.l.b16 %v143
    %v258 = vunpack.c.h.b16 %v143
    %v259 = vunpack.c.l.b16 %v144
    %v260 = vunpack.c.h.b16 %v144
    %v261 = vunpack.c.l.b16 %v145
    %v262 = vunpack.c.h.b16 %v145
    %v263 = vunpack.c.l.b16 %v146
    %v264 = vunpack.c.h.b16 %v146
    %v265 = vunpack.c.l.b16 %v147
    %v266 = vunpack.c.h.b16 %v147
    %v267 = vunpack.c.l.b16 %v148
    %v268 = vunpack.c.h.b16 %v148
    %v269 = vunpack.c.l.b16 %v149
    %v270 = vunpack.c.h.b16 %v149
    %v271 = vunpack.c.l.b16 %v150
    %v272 = vunpack.c.h.b16 %v150
    %v273 = vunpack.c.l.b16 %v151
    %v274 = vunpack.c.h.b16 %v151
    %v275 = vunpack.c.l.b16 %v152
    %v276 = vunpack.c.h.b16 %v152
    %v277 = vunpack.c.l.b16 %v153
    %v278 = vunpack.c.h.b16 %v153
    %v279 = vunpack.c.l.b16 %v154
    %v280 = vunpack.c.h.b16 %v154
    %v281 = vunpack.c.l.b16 %v155
    %v282 = vunpack.c.h.b16 %v155
    %v283 = vunpack.c.l.b16 %v156
    %v284 = vunpack.c.h.b16 %v156
    %v285 = vunpack.c.l.b16 %v157
    %v286 = vunpack.c.h.b16 %v157
    %v287 = vunpack.c.l.b16 %v158
    %v288 = vunpack.c.h.b16 %v158
    %v289 = vunpack.c.l.b16 %v159
    %v290 = vunpack.c.h.b16 %v159
    %v291 = vunpack.c.l.b16 %v160
    %v292 = vunpack.c.h.b16 %v160
    %v293 = vunpack.c.l.b16 %v161
    %v294 = vunpack.c.h.b16 %v161
    %v295 = vunpack.c.l.b16 %v162
    %v296 = vunpack.c.h.b16 %v162
    %v297 = vunpack.c.l.b16 %v163
    %v298 = vunpack.c.h.b16 %v163
    %v299 = vunpack.c.l.b16 %v164
    %v300 = vunpack.c.h.b16 %v164
    %v301 = vunpack.c.l.b16 %v165
    %v302 = vunpack.c.h.b16 %v165
    %v303 = vunpack.c.l.b16 %v166
    %v304 = vunpack.c.h.b16 %v166
    %v305 = vunpack.c.l.b16 %v167
    %v306 = vunpack.c.h.b16 %v167
    %v307 = vunpack.c.l.b16 %v168
    %v308 = vunpack.c.h.b16 %v168
    %v309 = vunpack.c.l.b16 %v169
    %v310 = vunpack.c.h.b16 %v169
    %v311 = vunpack.c.l.b16 %v170
    %v312 = vunpack.c.h.b16 %v170
    %v313 = vunpack.c.l.b16 %v171
    %v314 = vunpack.c.h.b16 %v171
    %v315 = vunpack.c.l.b16 %v172
    %v316 = vunpack.c.h.b16 %v172
    %v317 = vunpack.c.l.b16 %v173
    %v318 = vunpack.c.h.b16 %v173
    %v319 = vunpack.c.l.b16 %v174
    %v320 = vunpack.c.h.b16 %v174
    %v321 = vunpack.c.l.b16 %v175
    %v322 = vunpack.c.h.b16 %v175
    %v323 = vunpack.c.l.b16 %v176
    %v324 = vunpack.c.h.b16 %v176
    %v325 = vunpack.c.l.b16 %v177
    %v326 = vunpack.c.h.b16 %v177
    %v327 = vunpack.c.l.b16 %v178
    %v328 = vunpack.c.h.b16 %v178
    %v329 = vunpack.c.l.b16 %v179
    %v330 = vunpack.c.h.b16 %v179
    %v331 = vunpack.c.l.b16 %v180
    %v332 = vunpack.c.h.b16 %v180
    %v333 = vunpack.c.l.b16 %v181
    %v334 = vunpack.c.h.b16 %v181
    %v335 = vunpack.c.l.b16 %v182
    %v336 = vunpack.c.h.b16 %v182
    %v337 = vunpack.c.l.b16 %v183
    %v338 = vunpack.c.h.b16 %v183
    %v339 = vunpack.c.l.b16 %v184
    %v340 = vunpack.c.h.b16 %v184
    %v341 = vunpack.c.l.b16 %v185
    %v342 = vunpack.c.h.b16 %v185
    %v343 = vunpack.c.l.b16 %v186
    %v344 = vunpack.c.h.b16 %v186
    %v345 = vpack.c.b16 %v247, %v245
    %v346 = vpack.c.b16 %v248, %v246
    %v347 = vpack.c.b16 %v251, %v249
    %v348 = vpack.c.b16 %v252, %v250
    %v349 = vpack.c.b16 %v255, %v253
    %v350 = vpack.c.b16 %v256, %v254
    %v351 = vpack.c.b16 %v259, %v257
    %v352 = vpack.c.b16 %v260, %v258
    %v353 = vpack.c.b16 %v263, %v261
    %v354 = vpack.c.b16 %v264, %v262
    %v355 = vpack.c.b16 %v267, %v265
    %v356 = vpack.c.b16 %v268, %v266
    %v357 = vpack.c.b16 %v271, %v269
    %v358 = vpack.c.b16 %v272, %v270
    %v359 = vpack.c.b16 %v275, %v273
    %v360 = vpack.c.b16 %v276, %v274
    %v361 = vpack.c.b16 %v279, %v277
    %v362 = vpack.c.b16 %v280, %v278
    %v363 = vpack.c.b16 %v283, %v281
    %v364 = vpack.c.b16 %v284, %v282
    %v365 = vpack.c.b16 %v287, %v285
    %v366 = vpack.c.b16 %v288, %v286
    %v367 = vpack.c.b16 %v291, %v289
    %v368 = vpack.c.b16 %v292, %v290
    %v369 = vpack.c.b16 %v295, %v293
    %v370 = vpack.c.b16 %v296, %v294
    %v371 = vpack.c.b16 %v299, %v297
    %v372 = vpack.c.b16 %v300, %v298
    %v373 = vpack.c.b16 %v303, %v301
    %v374 = vpack.c.b16 %v304, %v302
    %v375 = vpack.c.b16 %v307, %v305
    %v376 = vpack.c.b16 %v308, %v306
    %v377 = vpack.c.b16 %v311, %v309
    %v378 = vpack.c.b16 %v312, %v310
    %v379 = vpack.c.b16 %v315, %v313
    %v380 = vpack.c.b16 %v316, %v314
    %v381 = vpack.c.b16 %v319, %v317
    %v382 = vpack.c.b16 %v320, %v318
    %v383 = vpack.c.b16 %v323, %v321
    %v384 = vpack.c.b16 %v324, %v322
    %v385 = vpack.c.b16 %v327, %v325
    %v386 = vpack.c.b16 %v328, %v326
    %v387 = vpack.c.b16 %v331, %v329
    %v388 = vpack.c.b16 %v332, %v330
    %v389 = vpack.c.b16 %v335, %v333
    %v390 = vpack.c.b16 %v336, %v334
    %v391 = vpack.c.b16 %v339, %v337
    %v392 = vpack.c.b16 %v340, %v338
    %v393 = vpack.c.b16 %v343, %v341
    %v394 = vpack.c.b16 %v344, %v342
    %vm445 = vcmask 130048
    %v447 = vsel %vm445, %v136, 0
    %449 = vmatprep.subr.bf16.mxu0 %v346
    %450 = vmatpush1.bf16.msra.mxu0 %v345
    %451 = vmatprep.subr.bf16.mxu0 %v348
    %452 = vmatpush1.bf16.msra.mxu0 %v347
    %453 = vmatprep.subr.bf16.mxu0 %v350
    %454 = vmatpush1.bf16.msra.mxu0 %v349
    %455 = vmatprep.subr.bf16.mxu0 %v352
    %456 = vmatpush1.bf16.msra.mxu0 %v351
    %457 = vmatprep.subr.bf16.mxu0 %v354
    %458 = vmatpush1.bf16.msra.mxu0 %v353
    %459 = vmatprep.subr.bf16.mxu0 %v356
    %460 = vmatpush1.bf16.msra.mxu0 %v355
    %461 = vmatprep.subr.bf16.mxu0 %v358
    %462 = vmatpush1.bf16.msra.mxu0 %v357
    %463 = vmatprep.subr.bf16.mxu0 %v360
    %464 = vmatpush1.bf16.msra.mxu0 %v359
    %465 = vmatprep.subr.bf16.mxu0 %v362
    %466 = vmatpush1.bf16.msra.mxu0 %v361
    %467 = vmatprep.subr.bf16.mxu0 %v364
    %468 = vmatpush1.bf16.msra.mxu0 %v363
    %469 = vmatprep.subr.bf16.mxu0 %v366
    %470 = vmatpush1.bf16.msra.mxu0 %v365
    %471 = vmatprep.subr.bf16.mxu0 %v368
    %472 = vmatpush1.bf16.msra.mxu0 %v367
    %473 = vmatprep.subr.bf16.mxu0 %v370
    %474 = vmatpush1.bf16.msra.mxu0 %v369
    %475 = vmatprep.subr.bf16.mxu0 %v372
    %476 = vmatpush1.bf16.msra.mxu0 %v371
    %477 = vmatprep.subr.bf16.mxu0 %v374
    %478 = vmatpush1.bf16.msra.mxu0 %v373
    %479 = vmatprep.subr.bf16.mxu0 %v376
    %480 = vmatpush1.bf16.msra.mxu0 %v375
    %481 = vmatprep.mubr.bf16.mxu0 %v134
    %482 = vmatmul.mubr.bf16.gmra.mrb[0].mxu0 %v133
    %v483 = vpop.f32.mrb[0].mxu0
    %v484 = vadd.f32 %v190, %v483
    %v485 = vpop.f32.mrb[0].mxu0
    %v486 = vadd.f32 %v194, %v485
    %v487 = vpop.f32.mrb[0].mxu0
    %v488 = vpop.f32.mrb[0].mxu0
    %489 = vdwg.mxu0
    %490 = vmatprep.subr.bf16.mxu0 %v378
    %491 = vmatpush1.bf16.msra.mxu0 %v377
    %492 = vmatprep.subr.bf16.mxu0 %v380
    %493 = vmatpush1.bf16.msra.mxu0 %v379
    %494 = vmatprep.subr.bf16.mxu0 %v382
    %495 = vmatpush1.bf16.msra.mxu0 %v381
    %496 = vmatprep.subr.bf16.mxu0 %v384
    %497 = vmatpush1.bf16.msra.mxu0 %v383
    %498 = vmatprep.subr.bf16.mxu0 %v386
    %499 = vmatpush1.bf16.msra.mxu0 %v385
    %500 = vmatprep.subr.bf16.mxu0 %v388
    %501 = vmatpush1.bf16.msra.mxu0 %v387
    %502 = vmatprep.subr.bf16.mxu0 %v390
    %503 = vmatpush1.bf16.msra.mxu0 %v389
    %504 = vmatprep.subr.bf16.mxu0 %v392
    %505 = vmatpush1.bf16.msra.mxu0 %v391
    %506 = vmatprep.subr.bf16.mxu0 %v394
    %507 = vmatpush1.bf16.msra.mxu0 %v393
    %508 = vmatprep.subr.bf16.mxu0 0
    %509 = vmatpush1.bf16.msra.mxu0 0
    %510 = vmatprep.subr.bf16.mxu0 0
    %511 = vmatpush1.bf16.msra.mxu0 0
    %512 = vmatprep.subr.bf16.mxu0 0
    %513 = vmatpush1.bf16.msra.mxu0 0
    %514 = vmatprep.subr.bf16.mxu0 0
    %515 = vmatpush1.bf16.msra.mxu0 0
    %516 = vmatprep.subr.bf16.mxu0 0
    %517 = vmatpush1.bf16.msra.mxu0 0
    %518 = vmatprep.subr.bf16.mxu0 0
    %519 = vmatpush1.bf16.msra.mxu0 0
    %520 = vmatprep.subr.bf16.mxu0 0
    %521 = vmatpush1.bf16.msra.mxu0 0
    %522 = vmatprep.mubr.bf16.mxu0 %v447
    %523 = vmatmul.mubr.bf16.gmra.mrb[0].mxu0 %v135
    %v524 = vpop.f32.mrb[0].mxu0
    %v525 = vadd.f32 %v484, %v524
    %v526 = vpop.f32.mrb[0].mxu0
    %v527 = vadd.f32 %v486, %v526
    %v528 = vpop.f32.mrb[0].mxu0
    %v529 = vpop.f32.mrb[0].mxu0
    %530 = vdwg.mxu0
    %v531 = vmax.f32 %v525, 0.0
    %v532 = vmax.f32 %v527, 0.0
    %v533 = vpack.c.bf16 %v531, %v531
    %v534 = vpack.c.bf16 %v532, %v532
    %v535 = vld [vmem:[#allocation2 + $0x190] sm:$0xf]
    %v536 = vld [vmem:[#allocation2 + $0x198] sm:$0xf]
    %v537 = vld [vmem:[#allocation2 + $0x1a0] sm:$0xf]
    %v538 = vld [vmem:[#allocation2 + $0x1a8] sm:$0xf]
    %v539 = vld [vmem:[#allocation2 + $0x1b0] sm:$0xf]
    %v540 = vld [vmem:[#allocation2 + $0x1b8] sm:$0xf]
    %v541 = vld [vmem:[#allocation2 + $0x1c0] sm:$0xf]
    %v542 = vld [vmem:[#allocation2 + $0x1c8] sm:$0xf]
    %v543 = vld [vmem:[#allocation2 + $0x1d0] sm:$0xf]
    %v544 = vld [vmem:[#allocation2 + $0x1d8] sm:$0xf]
    %v545 = vld [vmem:[#allocation2 + $0x1e0] sm:$0xf]
    %v546 = vld [vmem:[#allocation2 + $0x1e8] sm:$0xf]
    %v547 = vld [vmem:[#allocation2 + $0x1f0] sm:$0xf]
    %v548 = vld [vmem:[#allocation2 + $0x1f8] sm:$0xf]
    %v549 = vld [vmem:[#allocation2 + $0x200] sm:$0xf]
    %v550 = vld [vmem:[#allocation2 + $0x208] sm:$0xf]
    %v551 = vld [vmem:[#allocation2 + $0x210] sm:$0xf]
    %v552 = vld [vmem:[#allocation2 + $0x218] sm:$0xf]
    %v553 = vld [vmem:[#allocation2 + $0x220] sm:$0xf]
    %v554 = vld [vmem:[#allocation2 + $0x228] sm:$0xf]
    %v555 = vld [vmem:[#allocation2 + $0x230] sm:$0xf]
    %v556 = vld [vmem:[#allocation2 + $0x238] sm:$0xf]
    %v557 = vld [vmem:[#allocation2 + $0x240] sm:$0xf]
    %v558 = vld [vmem:[#allocation2 + $0x248] sm:$0xf]
    %v559 = vld [vmem:[#allocation2 + $0x250] sm:$0xf]
    %v560 = vld [vmem:[#allocation2 + $0x258] sm:$0xf]
    %v561 = vld [vmem:[#allocation2 + $0x260] sm:$0xf]
    %v562 = vld [vmem:[#allocation2 + $0x268] sm:$0xf]
    %v563 = vld [vmem:[#allocation2 + $0x270] sm:$0xf]
    %v564 = vld [vmem:[#allocation2 + $0x278] sm:$0xf]
    %v565 = vld [vmem:[#allocation2 + $0x280] sm:$0xf]
    %v566 = vld [vmem:[#allocation2 + $0x288] sm:$0xf]
    %v567 = vlaneseq
    %v568 = vshrl.u32 %v567, 7
    %v569 = vsub.s32 1, %v568
    %v570 = vrot.slane %v43, %v569
    %v603 = vunpack.c.l.b16 %v535
    %v604 = vunpack.c.l.b16 %v536
    %v605 = vunpack.c.l.b16 %v537
    %v606 = vunpack.c.l.b16 %v538
    %v607 = vunpack.c.l.b16 %v539
    %v608 = vunpack.c.l.b16 %v540
    %v609 = vunpack.c.l.b16 %v541
    %v610 = vunpack.c.l.b16 %v542
    %v611 = vunpack.c.l.b16 %v543
    %v612 = vunpack.c.l.b16 %v544
    %v613 = vunpack.c.l.b16 %v545
    %v614 = vunpack.c.l.b16 %v546
    %v615 = vunpack.c.l.b16 %v547
    %v616 = vunpack.c.l.b16 %v548
    %v617 = vunpack.c.l.b16 %v549
    %v618 = vunpack.c.l.b16 %v550
    %v619 = vunpack.c.l.b16 %v551
    %v620 = vunpack.c.l.b16 %v552
    %v621 = vunpack.c.l.b16 %v553
    %v622 = vunpack.c.l.b16 %v554
    %v623 = vunpack.c.l.b16 %v555
    %v624 = vunpack.c.l.b16 %v556
    %v625 = vunpack.c.l.b16 %v557
    %v626 = vunpack.c.l.b16 %v558
    %v627 = vunpack.c.l.b16 %v559
    %v628 = vunpack.c.l.b16 %v560
    %v629 = vunpack.c.l.b16 %v561
    %v630 = vunpack.c.l.b16 %v562
    %v631 = vunpack.c.l.b16 %v563
    %v632 = vunpack.c.l.b16 %v564
    %v633 = vunpack.c.l.b16 %v565
    %v634 = vunpack.c.l.b16 %v566
    %v635 = vpack.c.b16 %v604, %v603
    %v636 = vpack.c.b16 %v606, %v605
    %v637 = vpack.c.b16 %v608, %v607
    %v638 = vpack.c.b16 %v610, %v609
    %v639 = vpack.c.b16 %v612, %v611
    %v640 = vpack.c.b16 %v614, %v613
    %v641 = vpack.c.b16 %v616, %v615
    %v642 = vpack.c.b16 %v618, %v617
    %v643 = vpack.c.b16 %v620, %v619
    %v644 = vpack.c.b16 %v622, %v621
    %v645 = vpack.c.b16 %v624, %v623
    %v646 = vpack.c.b16 %v626, %v625
    %v647 = vpack.c.b16 %v628, %v627
    %v648 = vpack.c.b16 %v630, %v629
    %v649 = vpack.c.b16 %v632, %v631
    %v650 = vpack.c.b16 %v634, %v633
    %667 = vmatprep.subr.bf16.mxu0 0
    %668 = vmatpush1.bf16.msra.mxu0 %v635
    %669 = vmatprep.subr.bf16.mxu0 0
    %670 = vmatpush1.bf16.msra.mxu0 %v636
    %671 = vmatprep.subr.bf16.mxu0 0
    %672 = vmatpush1.bf16.msra.mxu0 %v637
    %673 = vmatprep.subr.bf16.mxu0 0
    %674 = vmatpush1.bf16.msra.mxu0 %v638
    %675 = vmatprep.subr.bf16.mxu0 0
    %676 = vmatpush1.bf16.msra.mxu0 %v639
    %677 = vmatprep.subr.bf16.mxu0 0
    %678 = vmatpush1.bf16.msra.mxu0 %v640
    %679 = vmatprep.subr.bf16.mxu0 0
    %680 = vmatpush1.bf16.msra.mxu0 %v641
    %681 = vmatprep.subr.bf16.mxu0 0
    %682 = vmatpush1.bf16.msra.mxu0 %v642
    %683 = vmatprep.subr.bf16.mxu0 0
    %684 = vmatpush1.bf16.msra.mxu0 %v643
    %685 = vmatprep.subr.bf16.mxu0 0
    %686 = vmatpush1.bf16.msra.mxu0 %v644
    %687 = vmatprep.subr.bf16.mxu0 0
    %688 = vmatpush1.bf16.msra.mxu0 %v645
    %689 = vmatprep.subr.bf16.mxu0 0
    %690 = vmatpush1.bf16.msra.mxu0 %v646
    %691 = vmatprep.subr.bf16.mxu0 0
    %692 = vmatpush1.bf16.msra.mxu0 %v647
    %693 = vmatprep.subr.bf16.mxu0 0
    %694 = vmatpush1.bf16.msra.mxu0 %v648
    %695 = vmatprep.subr.bf16.mxu0 0
    %696 = vmatpush1.bf16.msra.mxu0 %v649
    %697 = vmatprep.subr.bf16.mxu0 0
    %698 = vmatpush1.bf16.msra.mxu0 %v650
    %699 = vmatprep.mubr.bf16.mxu0 %v534
    %700 = vmatmul.mubr.bf16.gmra.mrb[0].mxu0 %v533
    %v701 = vpop.f32.mrb[0].mxu0
    %v702 = vadd.f32 %v570, %v701
    %v703 = vpop.f32.mrb[0].mxu0
    %v704 = vpop.f32.mrb[0].mxu0
    %v705 = vpop.f32.mrb[0].mxu0
    %706 = vdwg.mxu0
    %v707 = vmax.f32 %v702, 0.0
    %v708 = vld [vmem:[#allocation4] sm:$0xff]
    %v709 = vld [vmem:[#allocation4 + $0x10] sm:$0xff]
    %v710 = vlaneseq
    %v711 = vshrl.u32 %v710, 7
    %v712 = vsub.s32 2, %v711
    %v713 = vrot.slane %v43, %v712
    %v715 = vsel %vm445, %v707, 0
    %717 = vmatprep.subr.mxu0 0.0
    %718 = vmatpush1.msra.mxu0 %v708
    %719 = vmatprep.subr.mxu0 0.0
    %720 = vmatpush1.msra.mxu0 %v709
    %721 = vmatprep.subr.mxu0 0.0
    %722 = vmatpush1.msra.mxu0 0.0
    %723 = vmatprep.subr.mxu0 0.0
    %724 = vmatpush1.msra.mxu0 0.0
    %725 = vmatprep.subr.mxu0 0.0
    %726 = vmatpush1.msra.mxu0 0.0
    %727 = vmatprep.subr.mxu0 0.0
    %728 = vmatpush1.msra.mxu0 0.0
    %729 = vmatprep.subr.mxu0 0.0
    %730 = vmatpush1.msra.mxu0 0.0
    %731 = vmatprep.subr.mxu0 0.0
    %732 = vmatpush1.msra.mxu0 0.0
    %733 = vmatprep.subr.mxu0 0.0
    %734 = vmatpush1.msra.mxu0 0.0
    %735 = vmatprep.subr.mxu0 0.0
    %736 = vmatpush1.msra.mxu0 0.0
    %737 = vmatprep.subr.mxu0 0.0
    %738 = vmatpush1.msra.mxu0 0.0
    %739 = vmatprep.subr.mxu0 0.0
    %740 = vmatpush1.msra.mxu0 0.0
    %741 = vmatprep.subr.mxu0 0.0
    %742 = vmatpush1.msra.mxu0 0.0
    %743 = vmatprep.subr.mxu0 0.0
    %744 = vmatpush1.msra.mxu0 0.0
    %745 = vmatprep.subr.mxu0 0.0
    %746 = vmatpush1.msra.mxu0 0.0
    %747 = vmatprep.subr.mxu0 0.0
    %748 = vmatpush1.msra.mxu0 0.0
    %749 = vmatprep.subr.mxu0 0.0
    %750 = vmatpush1.msra.mxu0 0.0
    %751 = vmatprep.subr.mxu0 0.0
    %752 = vmatpush1.msra.mxu0 0.0
    %753 = vmatprep.subr.mxu0 0.0
    %754 = vmatpush1.msra.mxu0 0.0
    %755 = vmatprep.subr.mxu0 0.0
    %756 = vmatpush1.msra.mxu0 0.0
    %757 = vmatprep.subr.mxu0 0.0
    %758 = vmatpush1.msra.mxu0 0.0
    %759 = vmatprep.subr.mxu0 0.0
    %760 = vmatpush1.msra.mxu0 0.0
    %761 = vmatprep.subr.mxu0 0.0
    %762 = vmatpush1.msra.mxu0 0.0
    %763 = vmatprep.subr.mxu0 0.0
    %764 = vmatpush1.msra.mxu0 0.0
    %765 = vmatprep.subr.mxu0 0.0
    %766 = vmatpush1.msra.mxu0 0.0
    %767 = vmatprep.subr.mxu0 0.0
    %768 = vmatpush1.msra.mxu0 0.0
    %769 = vmatprep.subr.mxu0 0.0
    %770 = vmatpush1.msra.mxu0 0.0
    %771 = vmatprep.subr.mxu0 0.0
    %772 = vmatpush1.msra.mxu0 0.0
    %773 = vmatprep.subr.mxu0 0.0
    %774 = vmatpush1.msra.mxu0 0.0
    %775 = vmatprep.subr.mxu0 0.0
    %776 = vmatpush1.msra.mxu0 0.0
    %777 = vmatprep.subr.mxu0 0.0
    %778 = vmatpush1.msra.mxu0 0.0
    %779 = vmatprep.subr.mxu0 0.0
    %780 = vmatpush1.msra.mxu0 0.0
    %781 = vmatprep.mubr.f32.mxu0 0.0
    %782 = vmatmul.mubr.f32.gmra.mrb[0].mxu0 %v715
    %v783 = vpop.f32.mrb[0].mxu0
    %v784 = vadd.f32 %v713, %v783
    %v785 = vpop.f32.mrb[0].mxu0
    %786 = vdwg.mxu0
    %v787 = vmax.f32 %v784, 0.0
    %v788 = vld [vmem:[#allocation4 + $0x20] sm:$0xff]
    %v789 = vld [vmem:[#allocation4 + $0x30] sm:$0xff]
    %v790 = vlaneseq
    %v791 = vshrl.u32 %v790, 7
    %v792 = vsub.s32 3, %v791
    %v793 = vrot.slane %v43, %v792
    %v795 = vsel %vm445, %v787, 0
    %797 = vmatprep.subr.mxu0 0.0
    %798 = vmatpush1.msra.mxu0 %v788
    %799 = vmatprep.subr.mxu0 0.0
    %800 = vmatpush1.msra.mxu0 %v789
    %801 = vmatprep.subr.mxu0 0.0
    %802 = vmatpush1.msra.mxu0 0.0
    %803 = vmatprep.subr.mxu0 0.0
    %804 = vmatpush1.msra.mxu0 0.0
    %805 = vmatprep.subr.mxu0 0.0
    %806 = vmatpush1.msra.mxu0 0.0
    %807 = vmatprep.subr.mxu0 0.0
    %808 = vmatpush1.msra.mxu0 0.0
    %809 = vmatprep.subr.mxu0 0.0
    %810 = vmatpush1.msra.mxu0 0.0
    %811 = vmatprep.subr.mxu0 0.0
    %812 = vmatpush1.msra.mxu0 0.0
    %813 = vmatprep.subr.mxu0 0.0
    %814 = vmatpush1.msra.mxu0 0.0
    %815 = vmatprep.subr.mxu0 0.0
    %816 = vmatpush1.msra.mxu0 0.0
    %817 = vmatprep.subr.mxu0 0.0
    %818 = vmatpush1.msra.mxu0 0.0
    %819 = vmatprep.subr.mxu0 0.0
    %820 = vmatpush1.msra.mxu0 0.0
    %821 = vmatprep.subr.mxu0 0.0
    %822 = vmatpush1.msra.mxu0 0.0
    %823 = vmatprep.subr.mxu0 0.0
    %824 = vmatpush1.msra.mxu0 0.0
    %825 = vmatprep.subr.mxu0 0.0
    %826 = vmatpush1.msra.mxu0 0.0
    %827 = vmatprep.subr.mxu0 0.0
    %828 = vmatpush1.msra.mxu0 0.0
    %829 = vmatprep.subr.mxu0 0.0
    %830 = vmatpush1.msra.mxu0 0.0
    %831 = vmatprep.subr.mxu0 0.0
    %832 = vmatpush1.msra.mxu0 0.0
    %833 = vmatprep.subr.mxu0 0.0
    %834 = vmatpush1.msra.mxu0 0.0
    %835 = vmatprep.subr.mxu0 0.0
    %836 = vmatpush1.msra.mxu0 0.0
    %837 = vmatprep.subr.mxu0 0.0
    %838 = vmatpush1.msra.mxu0 0.0
    %839 = vmatprep.subr.mxu0 0.0
    %840 = vmatpush1.msra.mxu0 0.0
    %841 = vmatprep.subr.mxu0 0.0
    %842 = vmatpush1.msra.mxu0 0.0
    %843 = vmatprep.subr.mxu0 0.0
    %844 = vmatpush1.msra.mxu0 0.0
    %845 = vmatprep.subr.mxu0 0.0
    %846 = vmatpush1.msra.mxu0 0.0
    %847 = vmatprep.subr.mxu0 0.0
    %848 = vmatpush1.msra.mxu0 0.0
    %849 = vmatprep.subr.mxu0 0.0
    %850 = vmatpush1.msra.mxu0 0.0
    %851 = vmatprep.subr.mxu0 0.0
    %852 = vmatpush1.msra.mxu0 0.0
    %853 = vmatprep.subr.mxu0 0.0
    %854 = vmatpush1.msra.mxu0 0.0
    %855 = vmatprep.subr.mxu0 0.0
    %856 = vmatpush1.msra.mxu0 0.0
    %857 = vmatprep.subr.mxu0 0.0
    %858 = vmatpush1.msra.mxu0 0.0
    %859 = vmatprep.subr.mxu0 0.0
    %860 = vmatpush1.msra.mxu0 0.0
    %861 = vmatprep.mubr.f32.mxu0 0.0
    %862 = vmatmul.mubr.f32.gmra.mrb[0].mxu0 %v795
    %v863 = vpop.f32.mrb[0].mxu0
    %v864 = vadd.f32 %v793, %v863
    %v865 = vpop.f32.mrb[0].mxu0
    %866 = vdwg.mxu0
    %v867 = vmax.f32 %v864, 0.0
    %v868 = vld [vmem:[#allocation4 + $0x40] sm:$0xff]
    %v869 = vlaneseq
    %v870 = vshrl.u32 %v869, 7
    %v871 = vsub.s32 4, %v870
    %v872 = vrot.slane %v43, %v871
    %vm873 = vcmask 64512
    %v875 = vsel %vm873, %v867, 0
    %877 = vmatprep.subr.mxu0 0.0
    %878 = vmatpush1.msra.mxu0 %v868
    %879 = vmatprep.subr.mxu0 0.0
    %880 = vmatpush1.msra.mxu0 0.0
    %881 = vmatprep.subr.mxu0 0.0
    %882 = vmatpush1.msra.mxu0 0.0
    %883 = vmatprep.subr.mxu0 0.0
    %884 = vmatpush1.msra.mxu0 0.0
    %885 = vmatprep.subr.mxu0 0.0
    %886 = vmatpush1.msra.mxu0 0.0
    %887 = vmatprep.subr.mxu0 0.0
    %888 = vmatpush1.msra.mxu0 0.0
    %889 = vmatprep.subr.mxu0 0.0
    %890 = vmatpush1.msra.mxu0 0.0
    %891 = vmatprep.subr.mxu0 0.0
    %892 = vmatpush1.msra.mxu0 0.0
    %893 = vmatprep.subr.mxu0 0.0
    %894 = vmatpush1.msra.mxu0 0.0
    %895 = vmatprep.subr.mxu0 0.0
    %896 = vmatpush1.msra.mxu0 0.0
    %897 = vmatprep.subr.mxu0 0.0
    %898 = vmatpush1.msra.mxu0 0.0
    %899 = vmatprep.subr.mxu0 0.0
    %900 = vmatpush1.msra.mxu0 0.0
    %901 = vmatprep.subr.mxu0 0.0
    %902 = vmatpush1.msra.mxu0 0.0
    %903 = vmatprep.subr.mxu0 0.0
    %904 = vmatpush1.msra.mxu0 0.0
    %905 = vmatprep.subr.mxu0 0.0
    %906 = vmatpush1.msra.mxu0 0.0
    %907 = vmatprep.subr.mxu0 0.0
    %908 = vmatpush1.msra.mxu0 0.0
    %909 = vmatprep.subr.mxu0 0.0
    %910 = vmatpush1.msra.mxu0 0.0
    %911 = vmatprep.subr.mxu0 0.0
    %912 = vmatpush1.msra.mxu0 0.0
    %913 = vmatprep.subr.mxu0 0.0
    %914 = vmatpush1.msra.mxu0 0.0
    %915 = vmatprep.subr.mxu0 0.0
    %916 = vmatpush1.msra.mxu0 0.0
    %917 = vmatprep.subr.mxu0 0.0
    %918 = vmatpush1.msra.mxu0 0.0
    %919 = vmatprep.subr.mxu0 0.0
    %920 = vmatpush1.msra.mxu0 0.0
    %921 = vmatprep.subr.mxu0 0.0
    %922 = vmatpush1.msra.mxu0 0.0
    %923 = vmatprep.subr.mxu0 0.0
    %924 = vmatpush1.msra.mxu0 0.0
    %925 = vmatprep.subr.mxu0 0.0
    %926 = vmatpush1.msra.mxu0 0.0
    %927 = vmatprep.subr.mxu0 0.0
    %928 = vmatpush1.msra.mxu0 0.0
    %929 = vmatprep.subr.mxu0 0.0
    %930 = vmatpush1.msra.mxu0 0.0
    %931 = vmatprep.subr.mxu0 0.0
    %932 = vmatpush1.msra.mxu0 0.0
    %933 = vmatprep.subr.mxu0 0.0
    %934 = vmatpush1.msra.mxu0 0.0
    %935 = vmatprep.subr.mxu0 0.0
    %936 = vmatpush1.msra.mxu0 0.0
    %937 = vmatprep.subr.mxu0 0.0
    %938 = vmatpush1.msra.mxu0 0.0
    %939 = vmatprep.subr.mxu0 0.0
    %940 = vmatpush1.msra.mxu0 0.0
    %941 = vmatprep.mubr.f32.mxu0 0.0
    %942 = vmatmul.mubr.f32.gmra.mrb[0].mxu0 %v875
    %v943 = vpop.f32.mrb[0].mxu0
    %v944 = vadd.f32 %v872, %v943
    %v945 = vpop.f32.mrb[0].mxu0
    %946 = vdwg.mxu0
    %947 = vst [vmem:[%s3] sm:$0xff] %v944
    // Predicated region
    $region22: #{cnn_net_forward_batch.1} parent=1 // pred_check
      _
    $region23: #{cnn_net_forward_batch.1} parent=1 // pred_check_branch
      %949 = sbr.rel (0) target = $region25
    $region24: #{cnn_net_forward_batch.1} parent=1 // pred_region
      _
    $region25: #{cnn_net_forward_batch.1} parent=1 // pred_fallthru
      _
    // Predicated region
    $region26: #{cnn_net_forward_batch.1} parent=1 // pred_check
      _
    $region27: #{cnn_net_forward_batch.1} parent=1 // pred_check_branch
      %951 = sbr.rel (0) target = $region29
    $region28: #{cnn_net_forward_batch.1} parent=1 // pred_region
      _
    $region29: #{cnn_net_forward_batch.1} parent=1 // pred_fallthru
      _
    %952 = vsyncpa [#allocation3], 1
    %953 = vsyncpa [#allocation5], 1

</llo_original>
